<compile_context>
chip_gen: v5e
topology: v5e:2x2
jax: 0.10.0
libtpu: 0.0.40
codegen_flags: <defaults>
</compile_context>

<pallas_src>
import jax
import jax.numpy as jnp
from jax import lax
from jax.experimental import pallas as pl
from jax.experimental.pallas import tpu as pltpu

LOG_2PI = 1.8378770664093453


def _softplus(x):
    # Guarded softplus (overflow-safe, mirrors torch.nn.functional.softplus).
    return jnp.where(x > 20.0, x, jnp.log1p(jnp.exp(jnp.minimum(x, 20.0))))


# ------------------------------ kernels -------------------------------------


def _prev_rows(x, P, D):
    """prev[flat_t] = x[flat_t - 1] in the lane-packed (rows, P*D) layout.

    Lane-roll by D shifts each packed timestep into its successor's slot; the
    first feature group of every row additionally takes a one-row sublane
    carry.  The wrap rows (block row 0 / lane group 0) land exactly on t==0
    positions, which every caller masks or overwrites.
    """
    L = x.shape[-1]
    lane_rolled = pltpu.roll(x, shift=D, axis=1) if P > 1 else x
    carried = pltpu.roll(lane_rolled, shift=1, axis=0)
    lane = lax.broadcasted_iota(jnp.int32, (1, L), 1)
    return jnp.where(lane < D, carried, lane_rolled)


def _make_init_kernel(P, D, compute_logp):
    """cond_sample is None.  Fully 2-D lane-packed body: roll+dot+fma+store.

    All t==0 specialisation (mu0 / sigma0) lives in the precomputed constant
    tables mask/bfill/inv/c, so there is no per-tile select, div, log or
    softplus.  Garbage prev values at t==0 are annihilated by mask==0.
    """
    if compute_logp:
        def kernel(x_ref, w_ref, mask_ref, bfill_ref, inv_ref, c_ref,
                   mean_ref, logp_ref):
            x = x_ref[...]
            prev = _prev_rows(x, P, D)
            xw = jnp.dot(prev, w_ref[...], preferred_element_type=jnp.float32)
            mean = xw * mask_ref[...] + bfill_ref[...]
            mean_ref[...] = mean
            z = (x - mean) * inv_ref[...]
            logp_ref[...] = c_ref[...] - 0.5 * (z * z)
    else:
        def kernel(x_ref, w_ref, mask_ref, bfill_ref, mean_ref):
            prev = _prev_rows(x_ref[...], P, D)
            xw = jnp.dot(prev, w_ref[...], preferred_element_type=jnp.float32)
            mean_ref[...] = xw * mask_ref[...] + bfill_ref[...]
    return kernel


def _make_cond_kernel(P, D, compute_logp):
    """cond_sample given: each batch's t==0 prev row is cond_sample[b]."""
    def body(x_ref, cond_ref, w_ref, b_ref, mean_ref,
             inv_ref=None, c_ref=None, logp_ref=None):
        x3 = x_ref[...]                               # (bb, Tp, L)
        bb, Tp, L = x3.shape
        x2 = x3.reshape(bb * Tp, L)
        prev2 = _prev_rows(x2, P, D)
        # Insert cond_sample at every batch's t==0 feature slot (needs the
        # batch axis visible, hence the 3-D view on this branch only).
        lane3 = lax.broadcasted_iota(jnp.int32, (1, 1, L), 2)
        row3 = lax.broadcasted_iota(jnp.int32, (1, Tp, 1), 1)
        is_first = (row3 == 0) & (lane3 < D)          # (1, Tp, L)
        prev3 = jnp.where(is_first, cond_ref[...], prev2.reshape(bb, Tp, L))
        xw = jnp.dot(prev3.reshape(bb * Tp, L), w_ref[...],
                     preferred_element_type=jnp.float32)
        mean2 = xw + b_ref[...]                       # b_ref (1, L)
        mean_ref[...] = mean2.reshape(bb, Tp, L)
        if compute_logp:
            z = (x2 - mean2) * inv_ref[...]
            logp_ref[...] = (c_ref[...] - 0.5 * (z * z)).reshape(bb, Tp, L)

    if compute_logp:
        def kernel(x_ref, cond_ref, w_ref, b_ref, inv_ref, c_ref,
                   mean_ref, logp_ref):
            body(x_ref, cond_ref, w_ref, b_ref, mean_ref,
                 inv_ref=inv_ref, c_ref=c_ref, logp_ref=logp_ref)
    else:
        def kernel(x_ref, cond_ref, w_ref, b_ref, mean_ref):
            body(x_ref, cond_ref, w_ref, b_ref, mean_ref)
    return kernel


# ------------------------------ wrapper -------------------------------------


def _pack_factor(T, D):
    """Timesteps packed per 128-lane vreg row (1 = unpacked fallback)."""
    if D <= 128 and 128 % D == 0 and T % (128 // D) == 0:
        return 128 // D
    # TODO(synk): pad T (and unpad outputs) so odd T/D shapes still get
    # lane-dense 128-wide stores instead of the masked D-lane fallback.
    return 1


def _pick_batches(B, Tp, lane_bytes, *, align, target_bytes=512 * 1024):
    """Batch elements per block: a divisor of B giving ~target_bytes blocks.

    2-D blocks (align=True) additionally need the row count to be a multiple
    of 8 sublanes, unless the block covers the whole batch (block dim == array
    dim satisfies the (8,128) rule by equality).
    """
    target_rows = max(Tp, min(2048, max(8, target_bytes // max(lane_bytes, 1))))
    best = None
    for d in range(1, B + 1):
        if B % d:
            continue
        rows = d * Tp
        if rows > target_rows and best is not None:
            break
        if align and rows % 8 != 0 and d != B:
            continue
        best = d
    return best if best is not None else B


def prior_forward(param_sample, params, compute_log_prob=False,
                  cond_sample=None, dim_idx=None):
    """JAX/Pallas equivalent of PriorModel.forward (Gaussian AR(1) prior).

    param_sample: [B, T, D];  cond_sample: None or [B, 1, D].
    Returns (dists, log_p) if compute_log_prob else dists, with
    dists = (means, scales), each [B, T, D] (stand-in for the Normal list).
    """
    del dim_idx  # TODO(synk): dim_idx sub-selection is a hook of the abstract
    #              base class; this Gaussian AR(1) instantiation is full-dim.
    W, b, mu0, log_sig0, log_sig = (params[k] for k in
                                    ("W", "b", "mu0", "log_sig0", "log_sig"))
    B, T, D = param_sample.shape
    f32 = jnp.float32
    has_init = cond_sample is None

    # Lane packing: P timesteps per 128-lane row.
    P = _pack_factor(T, D)
    L = P * D
    Tp = T // P                       # packed rows per batch element
    Rtot = B * Tp

    x2 = param_sample.astype(f32).reshape(Rtot, L)            # free reshape
    w_big = jnp.kron(jnp.eye(P, dtype=f32), W.astype(f32))    # (L,L) blockdiag
    b_row = jnp.tile(b.reshape(1, D).astype(f32), (1, P))     # (1,L)
    sig = _softplus(log_sig.astype(f32)).reshape(1, D)

    n_out = 2 if compute_log_prob else 1
    w_spec = pl.BlockSpec((L, L), lambda i: (0, 0))

    if has_init:
        bb = _pick_batches(B, Tp, L * 4, align=True)
        Rb = bb * Tp
        grid = (B // bb,)

        # t-dependent terms as block-sized constant tables (constant index_map
        # -> fetched once); kernel body stays roll + dot + fma (+ logp).
        sig0 = _softplus(log_sig0.astype(f32)).reshape(1, D)
        t0 = (jnp.arange(T) == 0)[:, None]                          # (T,1)
        mask_td = jnp.where(t0, 0.0, 1.0).astype(f32) * jnp.ones((1, D), f32)
        bfill_td = jnp.where(t0, mu0.reshape(1, D).astype(f32),
                             b.reshape(1, D).astype(f32))
        inv_td = jnp.where(t0, 1.0 / sig0, 1.0 / sig)
        c_td = -(jnp.where(t0, jnp.log(sig0), jnp.log(sig)) + 0.5 * LOG_2PI)

        def tab(v):                                   # (T,D) -> (Rb,L)
            return jnp.tile(v.reshape(Tp, L), (bb, 1))

        blk = pl.BlockSpec((Rb, L), lambda i: (i, 0))
        cst = pl.BlockSpec((Rb, L), lambda i: (0, 0))

        args = [x2, w_big, tab(mask_td), tab(bfill_td)]
        in_specs = [blk, w_spec, cst, cst]
        n_tabs = 2
        if compute_log_prob:
            args += [tab(inv_td), tab(c_td)]
            in_specs += [cst, cst]
            n_tabs = 4

        kernel = _make_init_kernel(P, D, compute_log_prob)
        out_shape = tuple(jax.ShapeDtypeStruct((Rtot, L), f32)
                          for _ in range(n_out))
        out_specs = tuple(pl.BlockSpec((Rb, L), lambda i: (i, 0))
                          for _ in range(n_out))
        block_bytes = Rb * L * 4
    else:
        bb = _pick_batches(B, Tp, L * 4, align=False)
        grid = (B // bb,)

        x3 = x2.reshape(B, Tp, L)
        cond3 = jnp.tile(cond_sample.astype(f32).reshape(B, 1, D), (1, 1, P))
        inv_row = jnp.tile(1.0 / sig, (1, P))                       # (1,L)
        c_row = jnp.tile(-(jnp.log(sig) + 0.5 * LOG_2PI), (1, P))   # (1,L)

        x_blk = pl.BlockSpec((bb, Tp, L), lambda i: (i, 0, 0))
        cond_blk = pl.BlockSpec((bb, 1, L), lambda i: (i, 0, 0))
        row = pl.BlockSpec((1, L), lambda i: (0, 0))

        args = [x3, cond3, w_big, b_row]
        in_specs = [x_blk, cond_blk, w_spec, row]
        n_tabs = 1
        if compute_log_prob:
            args += [inv_row, c_row]
            in_specs += [row, row]
            n_tabs = 3

        kernel = _make_cond_kernel(P, D, compute_log_prob)
        out_shape = tuple(jax.ShapeDtypeStruct((B, Tp, L), f32)
                          for _ in range(n_out))
        out_specs = tuple(pl.BlockSpec((bb, Tp, L), lambda i: (i, 0, 0))
                          for _ in range(n_out))
        block_bytes = bb * Tp * L * 4

    # VMEM budget: streamed arrays double-buffered, constants fetched once (we
    # still leave them double-buffer headroom).  Kept well under v7x's 64 MiB.
    # Invariant operands could also use pipeline_mode=pl.Buffered(1); skipped
    # since the constant index_map already avoids refetch and VMEM usage is
    # far from the limit at these tile sizes.
    needed = 2 * block_bytes * (1 + n_out + n_tabs) + 8 * L * L + (1 << 20)
    vmem_limit = int(min(64 << 20, max(16 << 20, 2 * needed)))

    flops = 2 * Rtot * L * L + 10 * Rtot * L
    bytes_accessed = 4 * (Rtot * L * (1 + n_out) + L * L + n_tabs * block_bytes)

    res = pl.pallas_call(
        kernel,
        out_shape=out_shape,
        grid_spec=pltpu.PrefetchScalarGridSpec(
            num_scalar_prefetch=0,
            grid=grid,
            in_specs=in_specs,
            out_specs=out_specs),
        compiler_params=pltpu.CompilerParams(
            dimension_semantics=("parallel",),
            vmem_limit_bytes=vmem_limit),
        cost_estimate=pl.CostEstimate(flops=int(flops), transcendentals=0,
                                      bytes_accessed=int(bytes_accessed)),
    )(*args)
    if not isinstance(res, (tuple, list)):
        res = (res,)

    means = res[0].reshape(B, T, D)
    logp = res[1].reshape(B, T, D) if compute_log_prob else None

    # scales are a pure broadcast of per-feature param rows -> built lazily in
    # XLA instead of being written (and DMA'd) by the kernel.
    sig_d = sig.reshape(D)
    if has_init:
        sig0_d = _softplus(log_sig0.astype(f32)).reshape(D)
        scale_td = jnp.where((jnp.arange(T) == 0)[:, None],
                             sig0_d[None, :], sig_d[None, :])       # (T,D)
    else:
        scale_td = jnp.broadcast_to(sig_d[None, :], (T, D))
    scales = jnp.broadcast_to(scale_td[None], (B, T, D))

    dists = (means, scales)   # stands in for the list of Normal dists
    if compute_log_prob:
        return dists, logp
    return dists
    # TODO(synk): PriorModel.sample() (sequential ancestral sampling) is a
    # data-dependent loop over time; it is left to a plain jax.lax.scan.


# ------------------------------ reference -----------------------------------


def _ref_forward(x, params, cond=None):
    """Pure-JAX reference mirroring the PyTorch semantics."""
    W, b, mu0, ls0, ls = (params[k] for k in
                          ("W", "b", "mu0", "log_sig0", "log_sig"))
    sig0 = _softplus(ls0)
    sig = _softplus(ls)
    if cond is None:
        prev = jnp.concatenate([jnp.zeros_like(x[:, :1]), x[:, :-1]], axis=1)
        mean = prev @ W + b
        mean = mean.at[:, 0].set(mu0)
        scale = jnp.broadcast_to(sig, mean.shape)
        scale = scale.at[:, 0].set(sig0)
    else:
        prev = jnp.concatenate([cond, x[:, :-1]], axis=1)
        mean = prev @ W + b
        scale = jnp.broadcast_to(sig, mean.shape)
    logp = -0.5 * ((x - mean) / scale) ** 2 - jnp.log(scale) - 0.5 * LOG_2PI
    return mean, scale, logp


def make_params(D, key):
    k1, k2, k3, k4, k5 = jax.random.split(key, 5)
    return dict(
        W=0.1 * jax.random.normal(k1, (D, D), jnp.float32),
        b=0.05 * jax.random.normal(k2, (D,), jnp.float32),
        mu0=jax.random.normal(k3, (D,), jnp.float32),
        log_sig0=0.1 * jax.random.normal(k4, (D,), jnp.float32),
        log_sig=0.1 * jax.random.normal(k5, (D,), jnp.float32),
    )


if __name__ == "__main__":
    B, T, D = 2, 8, 32
    key = jax.random.PRNGKey(0)
    kx, kc, kp = jax.random.split(key, 3)

    params = make_params(D, kp)
    param_sample = jax.random.normal(kx, (B, T, D), jnp.float32)
    cond_sample = jax.random.normal(kc, (B, 1, D), jnp.float32)

    # Branch 1: cond_sample=None, compute_log_prob=True
    (means, scales), logp = prior_forward(param_sample, params,
                                          compute_log_prob=True,
                                          cond_sample=None)
    jax.block_until_ready((means, scales, logp))
    rm, rs, rl = _ref_forward(param_sample, params, cond=None)
    assert jnp.allclose(means, rm, rtol=1e-5, atol=1e-5)
    assert jnp.allclose(scales, rs, rtol=1e-5, atol=1e-5)
    assert jnp.allclose(logp, rl, rtol=1e-5, atol=1e-5)

    # Branch 1b: cond_sample=None, compute_log_prob=False (module default;
    # mean-only kernel, no logp compute/writeback)
    means_m, scales_m = prior_forward(param_sample, params)
    jax.block_until_ready(means_m)
    assert jnp.allclose(means_m, rm, rtol=1e-5, atol=1e-5)
    assert jnp.allclose(scales_m, rs, rtol=1e-5, atol=1e-5)

    # Branch 2: with cond_sample, compute_log_prob=True
    (means_c, scales_c), logp_c = prior_forward(param_sample, params,
                                                compute_log_prob=True,
                                                cond_sample=cond_sample)
    jax.block_until_ready((means_c, scales_c, logp_c))
    rm, rs, rl = _ref_forward(param_sample, params, cond=cond_sample)
    assert jnp.allclose(means_c, rm, rtol=1e-5, atol=1e-5)
    assert jnp.allclose(scales_c, rs, rtol=1e-5, atol=1e-5)
    assert jnp.allclose(logp_c, rl, rtol=1e-5, atol=1e-5)

    # Branch 2b: with cond_sample, mean-only
    means_cm, scales_cm = prior_forward(param_sample, params,
                                        cond_sample=cond_sample)
    jax.block_until_ready(means_cm)
    assert jnp.allclose(means_cm, rm, rtol=1e-5, atol=1e-5)
    assert jnp.allclose(scales_cm, rs, rtol=1e-5, atol=1e-5)

    print("KERNEL_OK")
</pallas_src>

<mosaic_0001>
module attributes {stable_mosaic.version = 11 : i64} {
  func.func @kernel(%arg0: i32, %arg1: memref<4x128xf32, #tpu.memory_space<vmem>>, %arg2: memref<128x128xf32, #tpu.memory_space<vmem>>, %arg3: memref<4x128xf32, #tpu.memory_space<vmem>>, %arg4: memref<4x128xf32, #tpu.memory_space<vmem>>, %arg5: memref<4x128xf32, #tpu.memory_space<vmem>>, %arg6: memref<4x128xf32, #tpu.memory_space<vmem>>, %arg7: memref<4x128xf32, #tpu.memory_space<vmem>>, %arg8: memref<4x128xf32, #tpu.memory_space<vmem>>) attributes {dimension_semantics = [#tpu.dimension_semantics<parallel>], iteration_bounds = array<i64: 1>, scalar_prefetch = 0 : i64, scratch_operands = 0 : i64, tpu.core_type = #tpu.core_type<tc>, window_params = [{transform_indices = @transform_0, window_bounds = array<i64: 4, 128>}, {pipeline_mode = #tpu.pipeline_mode<synchronous>, transform_indices = @transform_1, window_bounds = array<i64: 128, 128>}, {pipeline_mode = #tpu.pipeline_mode<synchronous>, transform_indices = @transform_2, window_bounds = array<i64: 4, 128>}, {pipeline_mode = #tpu.pipeline_mode<synchronous>, transform_indices = @transform_3, window_bounds = array<i64: 4, 128>}, {pipeline_mode = #tpu.pipeline_mode<synchronous>, transform_indices = @transform_4, window_bounds = array<i64: 4, 128>}, {pipeline_mode = #tpu.pipeline_mode<synchronous>, transform_indices = @transform_5, window_bounds = array<i64: 4, 128>}, {transform_indices = @transform_6, window_bounds = array<i64: 4, 128>}, {transform_indices = @transform_7, window_bounds = array<i64: 4, 128>}]} {
    %c0 = arith.constant 0 : index
    %c0_0 = arith.constant 0 : index
    %0 = vector.load %arg1[%c0, %c0_0] : memref<4x128xf32, #tpu.memory_space<vmem>>, vector<4x128xf32>
    %c32_i32 = arith.constant 32 : i32
    %1 = tpu.dynamic_rotate %0 by %c32_i32 dim 1 : vector<4x128xf32>, i32 -> vector<4x128xf32>
    %c1_i32 = arith.constant 1 : i32
    %2 = tpu.dynamic_rotate %1 by %c1_i32 dim 0 : vector<4x128xf32>, i32 -> vector<4x128xf32>
    %3 = tpu.iota {dimensions = array<i32: 1>} : vector<1x128xi32>
    %c32_i32_1 = arith.constant 32 : i32
    %4 = vector.broadcast %c32_i32_1 : i32 to vector<1x128xi32>
    %5 = arith.cmpi slt, %3, %4 : vector<1x128xi32>
    %6 = vector.shape_cast %5 : vector<1x128xi1> to vector<1x128xi1>
    %7 = vector.broadcast %6 : vector<1x128xi1> to vector<4x128xi1>
    %8 = arith.select %7, %2, %1 : vector<4x128xi1>, vector<4x128xf32>
    %c0_2 = arith.constant 0 : index
    %c0_3 = arith.constant 0 : index
    %9 = vector.load %arg2[%c0_2, %c0_3] : memref<128x128xf32, #tpu.memory_space<vmem>>, vector<128x128xf32>
    %cst = arith.constant dense<0.000000e+00> : vector<4x128xf32>
    %10 = tpu.matmul %8, %9, %cst {dimension_numbers = #tpu.dot_dimension_numbers<[1], [0], [0], [1], [0, 0, 1, 1], [], []>} : vector<4x128xf32>, vector<128x128xf32>, vector<4x128xf32> -> vector<4x128xf32>
    %c0_4 = arith.constant 0 : index
    %c0_5 = arith.constant 0 : index
    %11 = vector.load %arg3[%c0_4, %c0_5] : memref<4x128xf32, #tpu.memory_space<vmem>>, vector<4x128xf32>
    %12 = arith.mulf %10, %11 : vector<4x128xf32>
    %c0_6 = arith.constant 0 : index
    %c0_7 = arith.constant 0 : index
    %13 = vector.load %arg4[%c0_6, %c0_7] : memref<4x128xf32, #tpu.memory_space<vmem>>, vector<4x128xf32>
    %14 = arith.addf %12, %13 : vector<4x128xf32>
    %c0_8 = arith.constant 0 : index
    %c0_9 = arith.constant 0 : index
    %15 = vector.load %arg7[%c0_8, %c0_9] : memref<4x128xf32, #tpu.memory_space<vmem>>, vector<4x128xf32>
    tpu.vector_store %arg7[%c0_8, %c0_9], %14 {strides = array<i32>} : memref<4x128xf32, #tpu.memory_space<vmem>>, vector<4x128xf32>,
    %16 = arith.subf %0, %14 : vector<4x128xf32>
    %c0_10 = arith.constant 0 : index
    %c0_11 = arith.constant 0 : index
    %17 = vector.load %arg5[%c0_10, %c0_11] : memref<4x128xf32, #tpu.memory_space<vmem>>, vector<4x128xf32>
    %18 = arith.mulf %16, %17 : vector<4x128xf32>
    %c0_12 = arith.constant 0 : index
    %c0_13 = arith.constant 0 : index
    %19 = vector.load %arg6[%c0_12, %c0_13] : memref<4x128xf32, #tpu.memory_space<vmem>>, vector<4x128xf32>
    %20 = arith.mulf %18, %18 : vector<4x128xf32>
    %cst_14 = arith.constant 5.000000e-01 : f32
    %21 = vector.broadcast %cst_14 : f32 to vector<4x128xf32>
    %22 = arith.mulf %21, %20 : vector<4x128xf32>
    %23 = arith.subf %19, %22 : vector<4x128xf32>
    %c0_15 = arith.constant 0 : index
    %c0_16 = arith.constant 0 : index
    %24 = vector.load %arg8[%c0_15, %c0_16] : memref<4x128xf32, #tpu.memory_space<vmem>>, vector<4x128xf32>
    tpu.vector_store %arg8[%c0_15, %c0_16], %23 {strides = array<i32>} : memref<4x128xf32, #tpu.memory_space<vmem>>, vector<4x128xf32>,
    return
  }
  func.func @transform_0(%arg0: i32) -> (i32, i32) {
    %c0_i32 = arith.constant 0 : i32
    %c0_i32_0 = arith.constant 0 : i32
    return %arg0, %c0_i32 : i32, i32
  }
  func.func @transform_1(%arg0: i32) -> (i32, i32) {
    %c0_i32 = arith.constant 0 : i32
    %c0_i32_0 = arith.constant 0 : i32
    %c0_i32_1 = arith.constant 0 : i32
    return %c0_i32, %c0_i32_0 : i32, i32
  }
  func.func @transform_2(%arg0: i32) -> (i32, i32) {
    %c0_i32 = arith.constant 0 : i32
    %c0_i32_0 = arith.constant 0 : i32
    %c0_i32_1 = arith.constant 0 : i32
    return %c0_i32, %c0_i32_0 : i32, i32
  }
  func.func @transform_3(%arg0: i32) -> (i32, i32) {
    %c0_i32 = arith.constant 0 : i32
    %c0_i32_0 = arith.constant 0 : i32
    %c0_i32_1 = arith.constant 0 : i32
    return %c0_i32, %c0_i32_0 : i32, i32
  }
  func.func @transform_4(%arg0: i32) -> (i32, i32) {
    %c0_i32 = arith.constant 0 : i32
    %c0_i32_0 = arith.constant 0 : i32
    %c0_i32_1 = arith.constant 0 : i32
    return %c0_i32, %c0_i32_0 : i32, i32
  }
  func.func @transform_5(%arg0: i32) -> (i32, i32) {
    %c0_i32 = arith.constant 0 : i32
    %c0_i32_0 = arith.constant 0 : i32
    %c0_i32_1 = arith.constant 0 : i32
    return %c0_i32, %c0_i32_0 : i32, i32
  }
  func.func @transform_6(%arg0: i32) -> (i32, i32) {
    %c0_i32 = arith.constant 0 : i32
    %c0_i32_0 = arith.constant 0 : i32
    return %arg0, %c0_i32 : i32, i32
  }
  func.func @transform_7(%arg0: i32) -> (i32, i32) {
    %c0_i32 = arith.constant 0 : i32
    %c0_i32_0 = arith.constant 0 : i32
    return %arg0, %c0_i32 : i32, i32
  }
}

</mosaic_0001>

<llo_original>
// kernel: tpu_custom_call.1
$region0: #{tpu_custom_call.1}
  #allocation0 [shape = 'u32[]', space=smem, size = 0x4, offset = 0x4, fixed_abs, tag = 'smem constant byte address 0x4 - core index']
  #allocation1 [shape = 'u32[72,128]{1,0:T(1,128)}', space=vmem, size = 0x9000, scoped, tag = 'internal scratch']
  %s0 = inlined_call_operand.hbm [shape: f32[4,128], index: 0, kind: input, shape index: {}]
  %s1 = inlined_call_operand.hbm [shape: f32[128,128], index: 1, kind: input, shape index: {}]
  %s2 = inlined_call_operand.hbm [shape: f32[4,128], index: 2, kind: input, shape index: {}]
  %s3 = inlined_call_operand.hbm [shape: f32[4,128], index: 3, kind: input, shape index: {}]
  %s4 = inlined_call_operand.hbm [shape: f32[4,128], index: 4, kind: input, shape index: {}]
  %s5 = inlined_call_operand.vmem [shape: f32[4,128], index: 5, kind: input, shape index: {}]
  %s6 = inlined_call_operand.hbm [shape: f32[4,128], index: 6, kind: output, shape index: {0}]
  %s7 = inlined_call_operand.hbm [shape: f32[4,128], index: 7, kind: output, shape index: {1}]
  %8 = xla_tuple %s6, %s7
  %s9 = sld [smem:[#allocation0]]
  $region62: #{tpu_custom_call.1} parent=0
    _
  %s11 = ssub.s32 1, %s9
  %s12 = scalar_select 0, %s11, %s9
  $region1: #{tpu_custom_call.1} parent=0
    #allocation2 [shape = 'u8[2048]{0}', space=vmem, size = 0x800, scoped, tag = 'input window, operand 0, single buffered']
    #allocation3 [shape = 's32[1]{0}', space=sflag, size = 0x4, scoped, tag = 'scoped memory for tpu_custom_call.1']
    #allocation4 [shape = 's32[1]{0}', space=sflag, size = 0x4, scoped, tag = 'scoped memory for tpu_custom_call.1']
    #allocation5 [shape = 'u8[65536]{0}', space=vmem, size = 0x10000, scoped, tag = 'input window, operand 1, single buffered']
    #allocation6 [shape = 's32[1]{0}', space=sflag, size = 0x4, scoped, tag = 'scoped memory for tpu_custom_call.1']
    #allocation7 [shape = 'u8[2048]{0}', space=vmem, size = 0x800, scoped, tag = 'input window, operand 2, single buffered']
    #allocation8 [shape = 'u8[2048]{0}', space=vmem, size = 0x800, scoped, tag = 'input window, operand 3, single buffered']
    #allocation9 [shape = 's32[1]{0}', space=sflag, size = 0x4, scoped, tag = 'scoped memory for tpu_custom_call.1']
    #allocation10 [shape = 'u8[2048]{0}', space=vmem, size = 0x800, scoped, tag = 'input window, operand 4, single buffered']
    #allocation11 [shape = 'u8[2048]{0}', space=vmem, size = 0x800, scoped, tag = 'output window, operand 0, single buffered']
    #allocation12 [shape = 'u8[2048]{0}', space=vmem, size = 0x800, scoped, tag = 'output window, operand 1, single buffered']
    #allocation13 [shape = 's32[1]{0}', space=sflag, size = 0x4, scoped, tag = 'scoped memory for tpu_custom_call.1']
    %13 = vsyncpa [#allocation3], 0
    %14 = vsyncpa [#allocation6], 0
    %15 = vsyncpa [#allocation9], 0
    %16 = vsyncpa [#allocation4], 0
    %17 = vsyncpa [#allocation13], 0
    // Predicated region
    $region2: #{tpu_custom_call.1} parent=1 // pred_check
      _
    $region3: #{tpu_custom_call.1} parent=1 // pred_check_branch
      %19 = sbr.rel (0) target = $region5
    $region4: #{tpu_custom_call.1} parent=1 // pred_region
      %21 = vsyncadd [#allocation3], 0
      %s23 = sshll.u32 %s0, 4
      %s24 = int_to_ptr.hbm [resolvable:$true] %s23
      %s25 = sshll.u32 [#allocation2], 4
      %s26 = int_to_ptr.vmem [resolvable:$true] %s25
      %28 = dma.hbm_to_vmem [thread:$0]  %s24, 64, %s26, [#allocation3]
    $region5: #{tpu_custom_call.1} parent=1 // pred_fallthru
      _
    // Predicated region
    $region6: #{tpu_custom_call.1} parent=1 // pred_check
      _
    $region7: #{tpu_custom_call.1} parent=1 // pred_check_branch
      %30 = sbr.rel (0) target = $region9
    $region8: #{tpu_custom_call.1} parent=1 // pred_region
      %32 = vsyncadd [#allocation6], 0
      %s33 = sshll.u32 %s1, 4
      %s34 = int_to_ptr.hbm [resolvable:$true] %s33
      %s35 = sshll.u32 [#allocation5], 4
      %s36 = int_to_ptr.vmem [resolvable:$true] %s35
      %41 = dma.hbm_to_vmem [thread:$0]  %s34, 2048, %s36, [#allocation6], 128, 128, 8
    $region9: #{tpu_custom_call.1} parent=1 // pred_fallthru
      _
    // Predicated region
    $region10: #{tpu_custom_call.1} parent=1 // pred_check
      _
    $region11: #{tpu_custom_call.1} parent=1 // pred_check_branch
      %43 = sbr.rel (0) target = $region13
    $region12: #{tpu_custom_call.1} parent=1 // pred_region
      %45 = vsyncadd [#allocation6], 0
      %s47 = sshll.u32 %s2, 4
      %s48 = int_to_ptr.hbm [resolvable:$true] %s47
      %s49 = sshll.u32 [#allocation7], 4
      %s50 = int_to_ptr.vmem [resolvable:$true] %s49
      %52 = dma.hbm_to_vmem [thread:$0]  %s48, 64, %s50, [#allocation6]
    $region13: #{tpu_custom_call.1} parent=1 // pred_fallthru
      _
    // Predicated region
    $region14: #{tpu_custom_call.1} parent=1 // pred_check
      _
    $region15: #{tpu_custom_call.1} parent=1 // pred_check_branch
      %54 = sbr.rel (0) target = $region17
    $region16: #{tpu_custom_call.1} parent=1 // pred_region
      %56 = vsyncadd [#allocation9], 0
      %s58 = sshll.u32 %s3, 4
      %s59 = int_to_ptr.hbm [resolvable:$true] %s58
      %s60 = sshll.u32 [#allocation8], 4
      %s61 = int_to_ptr.vmem [resolvable:$true] %s60
      %63 = dma.hbm_to_vmem [thread:$0]  %s59, 64, %s61, [#allocation9]
    $region17: #{tpu_custom_call.1} parent=1 // pred_fallthru
      _
    // Predicated region
    $region18: #{tpu_custom_call.1} parent=1 // pred_check
      _
    $region19: #{tpu_custom_call.1} parent=1 // pred_check_branch
      %65 = sbr.rel (0) target = $region21
    $region20: #{tpu_custom_call.1} parent=1 // pred_region
      %67 = vsyncadd [#allocation9], 0
      %s69 = sshll.u32 %s4, 4
      %s70 = int_to_ptr.hbm [resolvable:$true] %s69
      %s71 = sshll.u32 [#allocation10], 4
      %s72 = int_to_ptr.vmem [resolvable:$true] %s71
      %74 = dma.hbm_to_vmem [thread:$0]  %s70, 64, %s72, [#allocation9]
    $region21: #{tpu_custom_call.1} parent=1 // pred_fallthru
      _
    // Predicated region
    $region22: #{tpu_custom_call.1} parent=1 // pred_check
      _
    $region23: #{tpu_custom_call.1} parent=1 // pred_check_branch
      %76 = sbr.rel (0) target = $region25
    $region24: #{tpu_custom_call.1} parent=1 // pred_region
      _
    $region25: #{tpu_custom_call.1} parent=1 // pred_fallthru
      _
    // Predicated region
    $region26: #{tpu_custom_call.1} parent=1 // pred_check
      _
    $region27: #{tpu_custom_call.1} parent=1 // pred_check_branch
      %78 = sbr.rel (0) target = $region29
    $region28: #{tpu_custom_call.1} parent=1 // pred_region
      %80 = dma.done [#allocation3], 64
    $region29: #{tpu_custom_call.1} parent=1 // pred_fallthru
      _
    // Predicated region
    $region30: #{tpu_custom_call.1} parent=1 // pred_check
      _
    $region31: #{tpu_custom_call.1} parent=1 // pred_check_branch
      %82 = sbr.rel (0) target = $region33
    $region32: #{tpu_custom_call.1} parent=1 // pred_region
      %84 = dma.done [#allocation6], 2048
    $region33: #{tpu_custom_call.1} parent=1 // pred_fallthru
      _
    // Predicated region
    $region34: #{tpu_custom_call.1} parent=1 // pred_check
      _
    $region35: #{tpu_custom_call.1} parent=1 // pred_check_branch
      %86 = sbr.rel (0) target = $region37
    $region36: #{tpu_custom_call.1} parent=1 // pred_region
      %88 = dma.done [#allocation6], 64
    $region37: #{tpu_custom_call.1} parent=1 // pred_fallthru
      _
    // Predicated region
    $region38: #{tpu_custom_call.1} parent=1 // pred_check
      _
    $region39: #{tpu_custom_call.1} parent=1 // pred_check_branch
      %90 = sbr.rel (0) target = $region41
    $region40: #{tpu_custom_call.1} parent=1 // pred_region
      %92 = dma.done [#allocation9], 64
    $region41: #{tpu_custom_call.1} parent=1 // pred_fallthru
      _
    // Predicated region
    $region42: #{tpu_custom_call.1} parent=1 // pred_check
      _
    $region43: #{tpu_custom_call.1} parent=1 // pred_check_branch
      %94 = sbr.rel (0) target = $region45
    $region44: #{tpu_custom_call.1} parent=1 // pred_region
      %96 = dma.done [#allocation9], 64
    $region45: #{tpu_custom_call.1} parent=1 // pred_fallthru
      _
    %v97 = vld [vmem:[#allocation2] sm:$0xf]
    %98 = vrot.lane.b32.xlu0 %v97, 32
    %v99 = vpop.permute.xlu0 %98
    %vm100 = vcmask 1047556
    %v101 = vrot.slane %v99, 4
    %v102 = vsel %vm100, %v101, %v99
    %v103 = vrot.slane %v102, 4
    %v104 = vsel %vm100, %v103, %v99
    %v105 = vlaneseq
    %v106 = vand.u32 %v105, 127
    %vm107 = vcmp.lt.s32.totalorder %v106, 32
    %v108 = vsel %vm107, 1, 0
    %vm109 = vcmp.eq.s32.totalorder %v108, 1
    %v111 = vrot.slane %v99, 5
    %v113 = vsel %vm109, %v104, %v111
    %v114 = vld [vmem:[#allocation5] sm:$0xff]
    %v115 = vld [vmem:[#allocation5 + $0x8] sm:$0xff]
    %v116 = vld [vmem:[#allocation5 + $0x10] sm:$0xff]
    %v117 = vld [vmem:[#allocation5 + $0x18] sm:$0xff]
    %v118 = vld [vmem:[#allocation5 + $0x20] sm:$0xff]
    %v119 = vld [vmem:[#allocation5 + $0x28] sm:$0xff]
    %v120 = vld [vmem:[#allocation5 + $0x30] sm:$0xff]
    %v121 = vld [vmem:[#allocation5 + $0x38] sm:$0xff]
    %v122 = vld [vmem:[#allocation5 + $0x40] sm:$0xff]
    %v123 = vld [vmem:[#allocation5 + $0x48] sm:$0xff]
    %v124 = vld [vmem:[#allocation5 + $0x50] sm:$0xff]
    %v125 = vld [vmem:[#allocation5 + $0x58] sm:$0xff]
    %v126 = vld [vmem:[#allocation5 + $0x60] sm:$0xff]
    %v127 = vld [vmem:[#allocation5 + $0x68] sm:$0xff]
    %v128 = vld [vmem:[#allocation5 + $0x70] sm:$0xff]
    %v129 = vld [vmem:[#allocation5 + $0x78] sm:$0xff]
    %v131 = vrot.slane %v113, 3
    %133 = vmatpush.msra.mxu0 %v129
    %134 = vmatpush.msra.mxu0 %v128
    %135 = vmatpush.msra.mxu0 %v127
    %136 = vmatpush.msra.mxu0 %v126
    %137 = vmatpush.msra.mxu0 %v125
    %138 = vmatpush.msra.mxu0 %v124
    %139 = vmatpush.msra.mxu0 %v123
    %140 = vmatpush.msra.mxu0 %v122
    %141 = vmatpush.msra.mxu0 %v121
    %142 = vmatpush.msra.mxu0 %v120
    %143 = vmatpush.msra.mxu0 %v119
    %144 = vmatpush.msra.mxu0 %v118
    %145 = vmatpush.msra.mxu0 %v117
    %146 = vmatpush.msra.mxu0 %v116
    %147 = vmatpush.msra.mxu0 %v115
    %148 = vmatpush.msra.mxu0 %v114
    %149 = vmatmul.f32.gmra.mxu0 %v131
    %v150 = vpop.f32.mrf.mxu0
    %v151 = vadd.f32 0.0, %v150
    %152 = vdwg.mxu0
    %v153 = vld [vmem:[#allocation7] sm:$0xf]
    %v154 = vmul.f32 %v151, %v153
    %v155 = vld [vmem:[#allocation8] sm:$0xf]
    %v156 = vadd.f32 %v154, %v155
    %157 = vst [vmem:[#allocation11] sm:$0xf] %v156
    %v158 = vsub.f32 %v97, %v156
    %v159 = vld [vmem:[#allocation10] sm:$0xf]
    %v160 = vmul.f32 %v158, %v159
    %v161 = vld [vmem:[%s5] sm:$0xf]
    %v162 = vmul.f32 %v160, %v160
    %v163 = vmul.f32 %v162, 0.5
    %v164 = vsub.f32 %v161, %v163
    %165 = vst [vmem:[#allocation12] sm:$0xf] %v164
    // Predicated region
    $region46: #{tpu_custom_call.1} parent=1 // pred_check
      _
    $region47: #{tpu_custom_call.1} parent=1 // pred_check_branch
      %167 = sbr.rel (0) target = $region49
    $region48: #{tpu_custom_call.1} parent=1 // pred_region
      %169 = vsyncadd [#allocation4], 0
      %s171 = sshll.u32 [#allocation11], 4
      %s172 = int_to_ptr.vmem [resolvable:$true] %s171
      %s173 = sshll.u32 %s6, 4
      %s174 = int_to_ptr.hbm [resolvable:$true] %s173
      %176 = dma.vmem_to_hbm [thread:$0]  %s172, 64, %s174, [#allocation4]
    $region49: #{tpu_custom_call.1} parent=1 // pred_fallthru
      _
    // Predicated region
    $region50: #{tpu_custom_call.1} parent=1 // pred_check
      _
    $region51: #{tpu_custom_call.1} parent=1 // pred_check_branch
      %178 = sbr.rel (0) target = $region53
    $region52: #{tpu_custom_call.1} parent=1 // pred_region
      %180 = vsyncadd [#allocation13], 0
      %s182 = sshll.u32 [#allocation12], 4
      %s183 = int_to_ptr.vmem [resolvable:$true] %s182
      %s184 = sshll.u32 %s7, 4
      %s185 = int_to_ptr.hbm [resolvable:$true] %s184
      %187 = dma.vmem_to_hbm [thread:$0]  %s183, 64, %s185, [#allocation13]
    $region53: #{tpu_custom_call.1} parent=1 // pred_fallthru
      _
    // Predicated region
    $region54: #{tpu_custom_call.1} parent=1 // pred_check
      _
    $region55: #{tpu_custom_call.1} parent=1 // pred_check_branch
      %189 = sbr.rel (0) target = $region57
    $region56: #{tpu_custom_call.1} parent=1 // pred_region
      %191 = dma.done [#allocation4], 64
    $region57: #{tpu_custom_call.1} parent=1 // pred_fallthru
      _
    // Predicated region
    $region58: #{tpu_custom_call.1} parent=1 // pred_check
      _
    $region59: #{tpu_custom_call.1} parent=1 // pred_check_branch
      %193 = sbr.rel (0) target = $region61
    $region60: #{tpu_custom_call.1} parent=1 // pred_region
      %195 = dma.done [#allocation13], 64
    $region61: #{tpu_custom_call.1} parent=1 // pred_fallthru
      _
    %196 = vsyncpa [#allocation3], 1
    %197 = vsyncpa [#allocation6], 1
    %198 = vsyncpa [#allocation9], 1
    %199 = vsyncpa [#allocation4], 1
    %200 = vsyncpa [#allocation13], 1

</llo_original>
